<compile_context>
chip_gen: v6e
topology: v6e:2x2x1
jax: 0.10.0
libtpu: 0.0.40
codegen_flags: <defaults>
</compile_context>

<pallas_src>
import jax
import jax.numpy as jnp
from jax.experimental import pallas as pl
from jax.experimental.pallas import tpu as pltpu


# ---------------------------------------------------------------------------
# Pallas kernel: affine normalization.  mean/scale broadcast against x either
# per-row (BR, 1) or per-lane (1, BL) — same body handles both via broadcasting.
# ---------------------------------------------------------------------------
def _norm_kernel(x_ref, mean_ref, scale_ref, out_ref):
    x = x_ref[...]
    m = mean_ref[...]
    s = scale_ref[...]
    # (x - m) * s keeps the tracked==0 identity (m=0, s=1) bit-exact.
    out_ref[...] = ((x - m) * s).astype(out_ref.dtype)


_TARGET_BLOCK_BYTES = 4 * 1024 * 1024  # ~4 MiB per block => ~16 MiB double-buffered


def _pick_block(dim, unit, cap):
    """Largest multiple of `unit` that divides `dim` and is <= cap.
    Falls back to `dim` itself (block == full array dim is always legal)."""
    if dim % unit != 0:
        return dim
    cap = max(cap, unit)
    best = unit
    d = unit
    limit = min(dim, cap)
    while d <= limit:
        if dim % d == 0:
            best = d
        d += unit
    return best


def running_norm2d_normalize(x, running_mean, running_var, num_batches_tracked):
    """Pallas implementation of the RunningNorm2D forward normalization.

    x: (N, C, H, W); running_mean/running_var: (C,); num_batches_tracked: scalar int.
    Returns the normalized tensor (identity when num_batches_tracked == 0).
    """
    assert x.ndim == 4, f"expected 4D input (got {x.ndim}D input)"
    N, C, H, W = x.shape
    assert running_mean.shape == (C,), running_mean.shape
    assert running_var.shape == (C,), running_var.shape

    dtype = x.dtype
    itemsize = jnp.dtype(dtype).itemsize
    tracked = jnp.asarray(num_batches_tracked)
    use_stats = tracked > 0

    rm = running_mean.astype(jnp.float32)
    rv = running_var.astype(jnp.float32)
    inv_std = 1.0 / (jnp.sqrt(rv) + 1e-8)
    # tracked == 0  => mean 0, scale 1  => exact identity through the kernel.
    mean_c = jnp.where(use_stats, rm, 0.0)
    scale_c = jnp.where(use_stats, inv_std, 1.0)

    spatial = H * W
    # Layout selection: prefer a lane axis that is a multiple of 128.
    use_lane_layout = (spatial % 128 != 0) and ((C * spatial) % 128 == 0)

    if use_lane_layout:
        # rows = N, lanes = C*H*W; params vary along the lane axis.
        R, L = N, C * spatial
        x2 = x.reshape(R, L)
        mean_p = jnp.repeat(mean_c, spatial)[None, :]    # (1, C*H*W)
        scale_p = jnp.repeat(scale_c, spatial)[None, :]  # (1, C*H*W)
    else:
        # rows = N*C (one (n, c) plane per row), lanes = H*W; params vary per row.
        R, L = N * C, spatial
        x2 = x.reshape(R, L)
        mean_p = jnp.broadcast_to(mean_c[None, :], (N, C)).reshape(R, 1)
        scale_p = jnp.broadcast_to(scale_c[None, :], (N, C)).reshape(R, 1)

    # Tile selection: lane-dense columns first, then sublane-dense rows, ~4 MiB.
    target_elems = max(8 * 128, _TARGET_BLOCK_BYTES // itemsize)
    BL = _pick_block(L, 128, max(128, min(L, target_elems // 8)))
    BR = _pick_block(R, 8, max(8, target_elems // max(BL, 1)))
    grid = (R // BR, L // BL)

    if use_lane_layout:
        param_spec = pl.BlockSpec((1, BL), lambda i, j: (0, j))
    else:
        param_spec = pl.BlockSpec((BR, 1), lambda i, j: (i, 0))

    cost = pl.CostEstimate(
        flops=2 * R * L,                                       # sub + mul per element
        transcendentals=0,
        bytes_accessed=2 * R * L * itemsize + 2 * (R + L) * 4,  # x read + out write + params
    )

    out2 = pl.pallas_call(
        _norm_kernel,
        out_shape=jax.ShapeDtypeStruct((R, L), dtype),
        grid_spec=pl.GridSpec(
            grid=grid,
            in_specs=[
                pl.BlockSpec((BR, BL), lambda i, j: (i, j)),
                param_spec,
                param_spec,
            ],
            out_specs=pl.BlockSpec((BR, BL), lambda i, j: (i, j)),
        ),
        compiler_params=pltpu.CompilerParams(
            dimension_semantics=("parallel", "parallel"),
            vmem_limit_bytes=32 * 1024 * 1024,
        ),
        cost_estimate=cost,
    )(x2, mean_p, scale_p)

    return out2.reshape(N, C, H, W)


# ---------------------------------------------------------------------------
# Training-time running-stats update (functional; mirrors the PyTorch order:
# mean is updated first, then variance is measured against the UPDATED mean).
# ---------------------------------------------------------------------------
def update_running_stats(x, running_mean, running_var, num_batches_tracked):
    # TODO(synk): sync_ddp_if_available (cross-replica mean) has no single-device
    # Pallas equivalent; this tiny per-step reduction stays in plain JAX.
    n = jnp.asarray(num_batches_tracked, dtype=jnp.int32) + 1
    n_f = n.astype(running_mean.dtype)
    n_mean = jnp.mean(x, axis=(0, 2, 3))
    new_mean = running_mean + (n_mean - running_mean) / n_f
    n_var = jnp.mean((x - new_mean[None, :, None, None]) ** 2, axis=(0, 2, 3))
    new_var = running_var + (n_var - running_var) / n_f
    return new_mean, new_var, n


def running_norm2d_forward(x, running_mean, running_var, num_batches_tracked,
                           *, training=False, max_iter=1024):
    """Full functional forward: returns (output, (new_mean, new_var, new_tracked))."""
    assert x.ndim == 4, f"expected 4D input (got {x.ndim}D input)"
    tracked = jnp.asarray(num_batches_tracked, dtype=jnp.int32)
    if training:
        do_update = tracked < max_iter
        upd_mean, upd_var, upd_tracked = update_running_stats(
            x, running_mean, running_var, tracked)
        running_mean = jnp.where(do_update, upd_mean, running_mean)
        running_var = jnp.where(do_update, upd_var, running_var)
        tracked = jnp.where(do_update, upd_tracked, tracked)
    out = running_norm2d_normalize(x, running_mean, running_var, tracked)
    return out, (running_mean, running_var, tracked)


# ---------------------------------------------------------------------------
# Pure-JAX reference mirroring the PyTorch module (for validation only).
# ---------------------------------------------------------------------------
def _reference_forward(x, mean, var, tracked, training, max_iter=1024):
    tracked = int(tracked)
    if training and tracked < max_iter:
        tracked += 1
        n_mean = jnp.mean(x, axis=(0, 2, 3))
        mean = mean + (n_mean - mean) / float(tracked)
        n_var = jnp.mean((x - mean[None, :, None, None]) ** 2, axis=(0, 2, 3))
        var = var + (n_var - var) / float(tracked)
    if tracked == 0:
        out = x
    else:
        out = (x - mean[None, :, None, None]) / (
            jnp.sqrt(var)[None, :, None, None] + 1e-08)
    return out, mean, var, tracked


if __name__ == "__main__":
    key = jax.random.PRNGKey(0)
    k1, k2, k3, k4 = jax.random.split(key, 4)

    N, C, H, W = 2, 4, 16, 16
    x = jax.random.normal(k1, (N, C, H, W), dtype=jnp.float32) * 2.0 + 0.5
    running_mean = jax.random.normal(k2, (C,), dtype=jnp.float32) * 0.1
    running_var = jax.random.uniform(k3, (C,), dtype=jnp.float32) + 0.5
    tracked = jnp.asarray(3, dtype=jnp.int32)

    # (a) eval path, tracked > 0 -> Pallas normalization ("row" layout: H*W % 128 == 0)
    out = running_norm2d_normalize(x, running_mean, running_var, tracked)
    out = jax.block_until_ready(out)
    ref, _, _, _ = _reference_forward(x, running_mean, running_var, 3, training=False)
    assert out.shape == (N, C, H, W), out.shape
    assert jnp.allclose(out, ref, atol=1e-5, rtol=1e-5), "mismatch vs reference (eval)"

    # (b) tracked == 0 -> exact identity through the same kernel
    out0 = jax.block_until_ready(
        running_norm2d_normalize(x, running_mean, running_var, jnp.asarray(0, jnp.int32)))
    assert jnp.array_equal(out0, x), "tracked==0 path is not identity"

    # (c) one training step: JAX stats update + Pallas normalize vs reference
    out_t, (m_t, v_t, n_t) = running_norm2d_forward(
        x, running_mean, running_var, tracked, training=True)
    out_t = jax.block_until_ready(out_t)
    ref_t, ref_m, ref_v, ref_n = _reference_forward(
        x, running_mean, running_var, 3, training=True)
    assert int(n_t) == ref_n
    assert jnp.allclose(m_t, ref_m, atol=1e-6, rtol=1e-6), "running_mean mismatch"
    assert jnp.allclose(v_t, ref_v, atol=1e-6, rtol=1e-6), "running_var mismatch"
    assert jnp.allclose(out_t, ref_t, atol=1e-5, rtol=1e-5), "mismatch vs reference (train)"

    # (d) odd spatial size exercising the lane-dense fallback layout
    #     (H*W = 64 not a multiple of 128, but C*H*W = 256 is).
    x_s = jax.random.normal(k4, (N, C, 8, 8), dtype=jnp.float32) * 1.5 - 0.25
    out_s = jax.block_until_ready(
        running_norm2d_normalize(x_s, running_mean, running_var, tracked))
    ref_s, _, _, _ = _reference_forward(x_s, running_mean, running_var, 3, training=False)
    assert jnp.allclose(out_s, ref_s, atol=1e-5, rtol=1e-5), "mismatch vs reference (lane layout)"

    print("KERNEL_OK")
</pallas_src>

<mosaic_0001>
module attributes {stable_mosaic.version = 11 : i64} {
  func.func @_norm_kernel(%arg0: i32, %arg1: i32, %arg2: memref<8x256xf32, #tpu.memory_space<vmem>>, %arg3: memref<8x1xf32, #tpu.memory_space<vmem>>, %arg4: memref<8x1xf32, #tpu.memory_space<vmem>>, %arg5: memref<8x256xf32, #tpu.memory_space<vmem>>) attributes {dimension_semantics = [#tpu.dimension_semantics<parallel>, #tpu.dimension_semantics<parallel>], iteration_bounds = array<i64: 1, 1>, scalar_prefetch = 0 : i64, scratch_operands = 0 : i64, tpu.core_type = #tpu.core_type<tc>, window_params = [{transform_indices = @transform_0, window_bounds = array<i64: 8, 256>}, {transform_indices = @transform_1, window_bounds = array<i64: 8, 1>}, {transform_indices = @transform_2, window_bounds = array<i64: 8, 1>}, {transform_indices = @transform_3, window_bounds = array<i64: 8, 256>}]} {
    %c0 = arith.constant 0 : index
    %c0_0 = arith.constant 0 : index
    %0 = vector.load %arg2[%c0, %c0_0] : memref<8x256xf32, #tpu.memory_space<vmem>>, vector<8x256xf32>
    %c0_1 = arith.constant 0 : index
    %c0_2 = arith.constant 0 : index
    %1 = vector.load %arg3[%c0_1, %c0_2] : memref<8x1xf32, #tpu.memory_space<vmem>>, vector<8x1xf32>
    %c0_3 = arith.constant 0 : index
    %c0_4 = arith.constant 0 : index
    %2 = vector.load %arg4[%c0_3, %c0_4] : memref<8x1xf32, #tpu.memory_space<vmem>>, vector<8x1xf32>
    %3 = vector.broadcast %1 : vector<8x1xf32> to vector<8x256xf32>
    %4 = arith.subf %0, %3 : vector<8x256xf32>
    %5 = vector.broadcast %2 : vector<8x1xf32> to vector<8x256xf32>
    %6 = arith.mulf %4, %5 : vector<8x256xf32>
    %c0_5 = arith.constant 0 : index
    %c0_6 = arith.constant 0 : index
    %7 = vector.load %arg5[%c0_5, %c0_6] : memref<8x256xf32, #tpu.memory_space<vmem>>, vector<8x256xf32>
    tpu.vector_store %arg5[%c0_5, %c0_6], %6 {strides = array<i32>} : memref<8x256xf32, #tpu.memory_space<vmem>>, vector<8x256xf32>,
    return
  }
  func.func @transform_0(%arg0: i32, %arg1: i32) -> (i32, i32) {
    %c0_i32 = arith.constant 0 : i32
    return %arg0, %arg1 : i32, i32
  }
  func.func @transform_1(%arg0: i32, %arg1: i32) -> (i32, i32) {
    %c0_i32 = arith.constant 0 : i32
    %c0_i32_0 = arith.constant 0 : i32
    return %arg0, %c0_i32 : i32, i32
  }
  func.func @transform_2(%arg0: i32, %arg1: i32) -> (i32, i32) {
    %c0_i32 = arith.constant 0 : i32
    %c0_i32_0 = arith.constant 0 : i32
    return %arg0, %c0_i32 : i32, i32
  }
  func.func @transform_3(%arg0: i32, %arg1: i32) -> (i32, i32) {
    %c0_i32 = arith.constant 0 : i32
    return %arg0, %arg1 : i32, i32
  }
}

</mosaic_0001>

<llo_original>
// kernel: tpu_custom_call.1
$region0: #{tpu_custom_call.1}
  #allocation0 [shape = 'u32[]', space=smem, size = 0x4, offset = 0x4, fixed_abs, tag = 'smem constant byte address 0x4 - core index']
  #allocation1 [shape = 'u32[144,128]{1,0:T(1,128)}', space=vmem, size = 0x12000, scoped, tag = 'internal scratch']
  %s0 = inlined_call_operand.vmem [shape: f32[8,256], index: 0, kind: input, shape index: {}]
  %s1 = inlined_call_operand.vmem [shape: f32[8,1], index: 1, kind: input, shape index: {}]
  %s2 = inlined_call_operand.vmem [shape: f32[8,1], index: 2, kind: input, shape index: {}]
  %s3 = inlined_call_operand.hbm [shape: f32[8,256], index: 3, kind: output, shape index: {}]
  %s4 = sld [smem:[#allocation0]]
  $region22: #{tpu_custom_call.1} parent=0
    _
  %s6 = ssub.s32 1, %s4
  %s7 = scalar_select 0, %s6, %s4
  $region1: #{tpu_custom_call.1} parent=0
    #allocation2 [shape = 'u8[8192]{0}', space=vmem, size = 0x2000, scoped, tag = 'output window, operand 0, single buffered']
    #allocation3 [shape = 's32[1]{0}', space=sflag, size = 0x4, scoped, tag = 'scoped memory for tpu_custom_call.1']
    %8 = vsyncpa [#allocation3], 0
    // Predicated region
    $region2: #{tpu_custom_call.1} parent=1 // pred_check
      _
    $region3: #{tpu_custom_call.1} parent=1 // pred_check_branch
      %10 = sbr.rel (0) target = $region5
    $region4: #{tpu_custom_call.1} parent=1 // pred_region
      _
    $region5: #{tpu_custom_call.1} parent=1 // pred_fallthru
      _
    // Predicated region
    $region6: #{tpu_custom_call.1} parent=1 // pred_check
      _
    $region7: #{tpu_custom_call.1} parent=1 // pred_check_branch
      %12 = sbr.rel (0) target = $region9
    $region8: #{tpu_custom_call.1} parent=1 // pred_region
      _
    $region9: #{tpu_custom_call.1} parent=1 // pred_fallthru
      _
    // Predicated region
    $region10: #{tpu_custom_call.1} parent=1 // pred_check
      _
    $region11: #{tpu_custom_call.1} parent=1 // pred_check_branch
      %14 = sbr.rel (0) target = $region13
    $region12: #{tpu_custom_call.1} parent=1 // pred_region
      _
    $region13: #{tpu_custom_call.1} parent=1 // pred_fallthru
      _
    %v15 = vld [vmem:[%s0] sm:$0xff]
    %v16 = vld [vmem:[%s0 + $0x8] sm:$0xff]
    %v17 = vld [vmem:[%s1] sm:$0xff]
    %v18 = vld [vmem:[%s2] sm:$0xff]
    %20 = vset.pattern.permute.xlu0 0
    %21 = vperm.xlu0 %20, %v17
    %v22 = vpop.permute.xlu0 %21
    %v24 = vsub.f32 %v15, %v22
    %v25 = vsub.f32 %v16, %v22
    %27 = vset.pattern.permute.xlu0 0
    %28 = vperm.xlu0 %27, %v18
    %v29 = vpop.permute.xlu0 %28
    %v31 = vmul.f32 %v24, %v29
    %v32 = vmul.f32 %v25, %v29
    %33 = vst [vmem:[#allocation2] sm:$0xff] %v31
    %34 = vst [vmem:[#allocation2 + $0x8] sm:$0xff] %v32
    // Predicated region
    $region14: #{tpu_custom_call.1} parent=1 // pred_check
      _
    $region15: #{tpu_custom_call.1} parent=1 // pred_check_branch
      %36 = sbr.rel (0) target = $region17
    $region16: #{tpu_custom_call.1} parent=1 // pred_region
      %s38 = ssub.s32 256, 256
      %39 = vsyncadd [#allocation3], %s38
      %s41 = sshll.u32 [#allocation2], 4
      %s42 = int_to_ptr.vmem [resolvable:$true] %s41
      %44 = dma.vmem_to_hbm [thread:$0]  %s42, 256, %s3, [#allocation3]
    $region17: #{tpu_custom_call.1} parent=1 // pred_fallthru
      _
    // Predicated region
    $region18: #{tpu_custom_call.1} parent=1 // pred_check
      _
    $region19: #{tpu_custom_call.1} parent=1 // pred_check_branch
      %46 = sbr.rel (0) target = $region21
    $region20: #{tpu_custom_call.1} parent=1 // pred_region
      %47 = dma.done [#allocation3], 256
    $region21: #{tpu_custom_call.1} parent=1 // pred_fallthru
      _
    %48 = vsyncpa [#allocation3], 1

</llo_original>
